<compile_context>
chip_gen: v6e
topology: v6e:2x2x1
jax: 0.10.0
libtpu: 0.0.40
codegen_flags: <defaults>
</compile_context>

<pallas_src>
import math

import jax
import jax.numpy as jnp
from jax.experimental import pallas as pl
from jax.experimental.pallas import tpu as pltpu


# ---------------------------------------------------------------------------
# Pallas kernel: per-sample modulated 1x1 conv (demodulate=False) + RGB bias
# ---------------------------------------------------------------------------
def _modconv1x1_bias_kernel(x_ref, w_ref, b_ref, o_ref):
    # x_ref: (C_in, TS)    lane-dense spatial tile of one sample
    # w_ref: (C_out, C_in) this sample's modulated 1x1 weight, f32
    # b_ref: (C_out, 1)    ToRGB bias, f32
    # o_ref: (C_out, TS)
    w = w_ref[...].astype(x_ref.dtype)  # tiny cast so the MXU sees x's dtype
    acc = jnp.dot(w, x_ref[...], preferred_element_type=jnp.float32)
    o_ref[...] = (acc + b_ref[...]).astype(o_ref.dtype)


# ---------------------------------------------------------------------------
# Tile selection: VMEM-budget-derived, lane-dense, megacore-friendly
# ---------------------------------------------------------------------------
def _choose_spatial_tile(spatial, c_in, batch, dtype_bytes,
                         per_buf_budget_bytes=6 << 20, min_grid_steps=4):
    """Pick a spatial tile (multiple of 128, or the full extent)."""
    # Budget for ONE x buffer (Pallas double-buffers it): c_in * tile * bytes.
    budget_lanes = (per_buf_budget_bytes // max(1, c_in * dtype_bytes)) // 128 * 128
    budget_lanes = max(128, budget_lanes)
    tile = spatial if spatial <= budget_lanes else budget_lanes
    # Megacore split: keep >= min_grid_steps "parallel" steps so both v7x TCs
    # get work even at batch 1-2 (only when spatial is large enough to split).
    steps = batch * (-(-spatial // tile))
    if steps < min_grid_steps and spatial >= 2 * 128:
        needed_tiles = -(-min_grid_steps // max(1, batch))
        split_tile = max(128, (spatial // needed_tiles) // 128 * 128)
        tile = min(tile, split_tile)
    return tile


def _vmem_limit_bytes(tile_s, c_in, c_out, dtype_bytes):
    """Explicit scoped-VMEM limit sized from the chosen tile (with headroom)."""
    x_bytes = 2 * c_in * tile_s * dtype_bytes            # double-buffered input
    o_bytes = 2 * c_out * tile_s * dtype_bytes           # double-buffered output
    w_bytes = 2 * max(c_out, 8) * max(c_in, 128) * 4     # padded (8,128) layout
    b_bytes = 2 * 8 * 128 * 4
    usage = x_bytes + o_bytes + w_bytes + b_bytes + (4 << 20)   # +4 MiB headroom
    return int(min(48 << 20, max(16 << 20, usage)))      # v7x-safe ceiling


# ---------------------------------------------------------------------------
# ToRGB_BUG.forward (skip=None path)
# ---------------------------------------------------------------------------
def to_rgb_bug_forward(x, style, conv_weight, mod_weight, mod_bias, rgb_bias,
                       skip=None, alfa=1.0, lr_mul=1.0,
                       per_buf_budget_bytes=6 << 20):
    """ToRGB_BUG.forward for the skip=None path.

    x:           (N, C_in, H, W)   NCHW feature map
    style:       (N, style_dim)
    conv_weight: (C_out, C_in)     ModulatedConv2d 1x1 weight (trailing 1x1 squeezed)
    mod_weight:  (C_in, style_dim) EqualLinear weight
    mod_bias:    (C_in,)           EqualLinear bias (init 1.0)
    rgb_bias:    (C_out,)          ToRGB bias
    alfa:        unused on the skip=None path (matches PyTorch).
    """
    if skip is not None:
        # TODO(synk): skip branch needs Upsample (upfirdn2d up=2 + [1,3,3,1] blur); not implemented in Pallas here.
        raise NotImplementedError("ToRGB_BUG skip/upsample branch not implemented")

    n, c_in, h, w = x.shape
    c_out = conv_weight.shape[0]
    style_dim = style.shape[1]
    spatial = h * w

    # 1) Style modulation (EqualLinear, bias_init=1) + per-sample modulated
    #    weight, all in fp32 with plain jnp (few-KFLOP, few-KB work -- not
    #    worth a pallas_call launch + HBM round trip).
    mod_scale = (1.0 / math.sqrt(style_dim)) * lr_mul
    s = (style.astype(jnp.float32) @ (mod_weight.astype(jnp.float32) * mod_scale).T
         + mod_bias.astype(jnp.float32) * lr_mul)                     # (N, C_in)
    conv_scale = 1.0 / math.sqrt(c_in * 1 * 1)                        # fan_in = C_in * k^2
    wmod = conv_scale * conv_weight.astype(jnp.float32)[None, :, :] * s[:, None, :]
    wmod = wmod.astype(jnp.float32)                                   # (N, C_out, C_in)

    # 2) Modulated 1x1 conv + bias, Pallas-tiled over the flattened spatial axis.
    dtype_bytes = jnp.dtype(x.dtype).itemsize
    tile_s = _choose_spatial_tile(spatial, c_in, n, dtype_bytes,
                                  per_buf_budget_bytes=per_buf_budget_bytes)
    grid = (n, pl.cdiv(spatial, tile_s))

    x3 = x.reshape(n, c_in, spatial)
    b2 = rgb_bias.astype(jnp.float32).reshape(c_out, 1)

    out3 = pl.pallas_call(
        _modconv1x1_bias_kernel,
        out_shape=jax.ShapeDtypeStruct((n, c_out, spatial), x.dtype),
        grid=grid,
        in_specs=[
            # batch dim squeezed -> kernel sees clean (C, TS) tiles
            pl.BlockSpec((None, c_in, tile_s), lambda b, t: (b, 0, t)),    # x
            pl.BlockSpec((None, c_out, c_in), lambda b, t: (b, 0, 0)),     # modulated weight
            pl.BlockSpec((c_out, 1), lambda b, t: (0, 0)),                 # rgb bias
        ],
        out_specs=pl.BlockSpec((None, c_out, tile_s), lambda b, t: (b, 0, t)),
        compiler_params=pltpu.CompilerParams(
            dimension_semantics=("parallel", "parallel"),
            vmem_limit_bytes=_vmem_limit_bytes(tile_s, c_in, c_out, dtype_bytes)),
    )(x3, wmod, b2)

    return out3.reshape(n, c_out, h, w)


if __name__ == "__main__":
    key = jax.random.PRNGKey(0)
    k_x, k_s, k_w, k_m, k_b = jax.random.split(key, 5)

    # Small shapes consistent with ToRGB: batch=2, in_channel=8, style_dim=32,
    # out_channel=3 (RGB), 16x16 spatial.
    N, C_IN, H, W = 2, 8, 16, 16
    C_OUT, STYLE_DIM = 3, 32

    x = jax.random.normal(k_x, (N, C_IN, H, W), dtype=jnp.float32)
    style = jax.random.normal(k_s, (N, STYLE_DIM), dtype=jnp.float32)

    # Parameters (same init distributions as the PyTorch module).
    conv_weight = jax.random.normal(k_w, (C_OUT, C_IN), dtype=jnp.float32)  # (1,Cout,Cin,1,1) squeezed
    mod_weight = jax.random.normal(k_m, (C_IN, STYLE_DIM), dtype=jnp.float32)
    mod_bias = jnp.ones((C_IN,), dtype=jnp.float32)          # EqualLinear bias_init=1
    rgb_bias = 0.1 * jax.random.normal(k_b, (C_OUT,), dtype=jnp.float32)

    # With spatial=256 and batch=2, the megacore rule picks tile_s=128 ->
    # grid (2, 2), which exercises the (batch, spatial) tiling + ragged logic.
    out = jax.block_until_ready(
        to_rgb_bug_forward(x, style, conv_weight, mod_weight, mod_bias, rgb_bias))

    # Pure-JAX reference of the same ToRGB_BUG forward (skip=None).
    s_ref = style @ (mod_weight * (1.0 / math.sqrt(STYLE_DIM))).T + mod_bias
    w_eff = (1.0 / math.sqrt(C_IN)) * conv_weight[None, :, :] * s_ref[:, None, :]
    ref = jnp.einsum("noc,nchw->nohw", w_eff, x) + rgb_bias.reshape(1, C_OUT, 1, 1)

    assert out.shape == (N, C_OUT, H, W) and out.dtype == x.dtype
    assert jnp.allclose(out, ref, atol=1e-4, rtol=1e-4), \
        float(jnp.max(jnp.abs(out - ref)))

    # Also exercise the bf16 input path (w_eff kept in f32, cast only for the dot).
    out_bf16 = jax.block_until_ready(
        to_rgb_bug_forward(x.astype(jnp.bfloat16), style, conv_weight,
                           mod_weight, mod_bias, rgb_bias))
    assert out_bf16.dtype == jnp.bfloat16
    assert jnp.allclose(out_bf16.astype(jnp.float32), ref, atol=5e-2, rtol=5e-2)

    print("KERNEL_OK")
</pallas_src>

<mosaic_0001>
module attributes {stable_mosaic.version = 11 : i64} {
  func.func @_modconv1x1_bias_kernel(%arg0: i32, %arg1: i32, %arg2: memref<1x8x128xf32, #tpu.memory_space<vmem>>, %arg3: memref<1x3x8xf32, #tpu.memory_space<vmem>>, %arg4: memref<3x1xf32, #tpu.memory_space<vmem>>, %arg5: memref<1x3x128xf32, #tpu.memory_space<vmem>>) attributes {dimension_semantics = [#tpu.dimension_semantics<parallel>, #tpu.dimension_semantics<parallel>], iteration_bounds = array<i64: 2, 2>, scalar_prefetch = 0 : i64, scratch_operands = 0 : i64, tpu.core_type = #tpu.core_type<tc>, window_params = [{transform_indices = @transform_0, window_bounds = array<i64: 1, 8, 128>}, {transform_indices = @transform_1, window_bounds = array<i64: 1, 3, 8>}, {pipeline_mode = #tpu.pipeline_mode<synchronous>, transform_indices = @transform_2, window_bounds = array<i64: 3, 1>}, {transform_indices = @transform_3, window_bounds = array<i64: 1, 3, 128>}]} {
    %c0 = arith.constant 0 : index
    %c0_0 = arith.constant 0 : index
    %c0_1 = arith.constant 0 : index
    %0 = vector.load %arg3[%c0, %c0_0, %c0_1] : memref<1x3x8xf32, #tpu.memory_space<vmem>>, vector<1x3x8xf32>
    %1 = vector.shape_cast %0 : vector<1x3x8xf32> to vector<3x8xf32>
    %c0_2 = arith.constant 0 : index
    %c0_3 = arith.constant 0 : index
    %c0_4 = arith.constant 0 : index
    %2 = vector.load %arg2[%c0_2, %c0_3, %c0_4] : memref<1x8x128xf32, #tpu.memory_space<vmem>>, vector<1x8x128xf32>
    %3 = vector.shape_cast %2 : vector<1x8x128xf32> to vector<8x128xf32>
    %cst = arith.constant dense<0.000000e+00> : vector<3x128xf32>
    %4 = tpu.matmul %1, %3, %cst {dimension_numbers = #tpu.dot_dimension_numbers<[1], [0], [0], [1], [0, 0, 1, 1], [], []>} : vector<3x8xf32>, vector<8x128xf32>, vector<3x128xf32> -> vector<3x128xf32>
    %c0_5 = arith.constant 0 : index
    %c0_6 = arith.constant 0 : index
    %5 = vector.load %arg4[%c0_5, %c0_6] : memref<3x1xf32, #tpu.memory_space<vmem>>, vector<3x1xf32>
    %6 = vector.broadcast %5 : vector<3x1xf32> to vector<3x128xf32>
    %7 = arith.addf %4, %6 : vector<3x128xf32>
    %c0_7 = arith.constant 0 : index
    %c0_8 = arith.constant 0 : index
    %c0_9 = arith.constant 0 : index
    %8 = vector.load %arg5[%c0_7, %c0_8, %c0_9] : memref<1x3x128xf32, #tpu.memory_space<vmem>>, vector<1x3x128xf32>
    %9 = vector.shape_cast %8 : vector<1x3x128xf32> to vector<3x128xf32>
    %10 = vector.shape_cast %7 : vector<3x128xf32> to vector<1x3x128xf32>
    tpu.vector_store %arg5[%c0_7, %c0_8, %c0_9], %10 {strides = array<i32>} : memref<1x3x128xf32, #tpu.memory_space<vmem>>, vector<1x3x128xf32>,
    return
  }
  func.func @transform_0(%arg0: i32, %arg1: i32) -> (i32, i32, i32) {
    %c0_i32 = arith.constant 0 : i32
    %c0_i32_0 = arith.constant 0 : i32
    return %arg0, %c0_i32, %arg1 : i32, i32, i32
  }
  func.func @transform_1(%arg0: i32, %arg1: i32) -> (i32, i32, i32) {
    %c0_i32 = arith.constant 0 : i32
    %c0_i32_0 = arith.constant 0 : i32
    %c0_i32_1 = arith.constant 0 : i32
    return %arg0, %c0_i32, %c0_i32_0 : i32, i32, i32
  }
  func.func @transform_2(%arg0: i32, %arg1: i32) -> (i32, i32) {
    %c0_i32 = arith.constant 0 : i32
    %c0_i32_0 = arith.constant 0 : i32
    %c0_i32_1 = arith.constant 0 : i32
    return %c0_i32, %c0_i32_0 : i32, i32
  }
  func.func @transform_3(%arg0: i32, %arg1: i32) -> (i32, i32, i32) {
    %c0_i32 = arith.constant 0 : i32
    %c0_i32_0 = arith.constant 0 : i32
    return %arg0, %c0_i32, %arg1 : i32, i32, i32
  }
}

</mosaic_0001>

<llo_original>
// kernel: tpu_custom_call.1
$region0: #{tpu_custom_call.1}
  #allocation0 [shape = 'u32[]', space=smem, size = 0x4, offset = 0x4, fixed_abs, tag = 'smem constant byte address 0x4 - core index']
  #allocation1 [shape = 'u32[144,128]{1,0:T(1,128)}', space=vmem, size = 0x12000, scoped, tag = 'internal scratch']
  %s0 = inlined_call_operand.hbm [shape: f32[2,8,256], index: 0, kind: input, shape index: {}]
  %s1 = inlined_call_operand.vmem [shape: f32[2,3,8], index: 1, kind: input, shape index: {}]
  %s2 = inlined_call_operand.vmem [shape: f32[3,1], index: 2, kind: input, shape index: {}]
  %s3 = inlined_call_operand.vmem [shape: f32[2,3,256], index: 3, kind: output, shape index: {}]
  %s4 = sld [smem:[#allocation0]]
  $region49: #{tpu_custom_call.1} parent=0
    _
  %s6 = ssub.s32 1, %s4
  %s7 = scalar_select 0, %s6, %s4
  $region1: #{tpu_custom_call.1} parent=0
    #allocation2 [shape = 'u8[8192]{0}', space=vmem, size = 0x2000, scoped, tag = 'input window, operand 0']
    #allocation3 [shape = 's32[2]{0}', space=sflag, size = 0x8, scoped, tag = 'scoped memory for tpu_custom_call.1']
    %8 = vsyncpa [#allocation3], 0
    %s9 = scalar_lea.sflag [#allocation3], 1
    %10 = vsyncpa %s9, 0
    loop: start=0, step=1, limit=6
    $region2: #{tpu_custom_call.1} parent=1 // loop_pre_header
      _
    $region3: #{tpu_custom_call.1} parent=1 // loop_header
      %s12 = sphi 0, %s16
      %p13 = scmp.ge.s32.totalorder %s12, 6
      %s19 = sphi 0, %s31
      %s20 = sphi 0, %s27
      %s21 = sphi 0, %s19
      %s22 = sphi 0, %s20
      %s23 = sphi 0, %s21
      %s24 = sphi 0, %s22
      %s36 = sphi 0, %s38
      %s39 = sphi 0, %s36
      %s40 = sphi 0, %s39
      %s56 = sphi 0, %s40
      %s62 = sphi 0, %s64
      %s65 = sphi 0, %s62
      %s66 = sphi 0, %s65
      %s82 = sphi 0, %s66
      %s86 = sphi 0, %s86
      %s88 = sphi 0, %s86
      %s89 = sphi 0, %s88
      %s103 = sphi 0, %s89
      %s111 = sphi 0, %s113
      %s114 = sphi 0, %s111
      %s115 = sphi 0, %s114
      %s131 = sphi 0, %s115
    $region4: #{tpu_custom_call.1} parent=1 // loop_header_branch
      %15 = sbr.rel (%p13) target = $region8
    $region5: #{tpu_custom_call.1} parent=1 // loop_body
      %s17 = ssub.s32 %s12, 1
      %s18 = ssub.s32 %s12, 2
      %s25 = sadd.s32 1, %s20
      %p26 = scmp.ge.s32.totalorder %s25, 2
      %s27 = scalar_select %p26, 0, %s25
      %s28 = sadd.s32 1, %s19
      %s29 = scalar_select %p26, %s28, %s19
      %p30 = scmp.ge.s32.totalorder %s29, 2
      %s31 = scalar_select %p30, 0, %s29
      %s32 = ssub.s32 %s19, %s31
      %s33 = ssub.s32 %s20, %s27
      %s34 = sor.u32 %s32, %s33
      %p35 = scmp.eq.s32.totalorder %s34, 0
      %s37 = sadd.s32 %s36, 1
      %s38 = scalar_select %p35, %s36, %s37
      %p41 = pneg %p35
      %p42 = scmp.eq.s32.totalorder %s12, 3
      %p43 = por %p41, %p42
      %p44 = scmp.ne.s32.totalorder %s36, %s39
      %p45 = scmp.eq.s32.totalorder %s12, 0
      %p46 = por %p44, %p45
      %p47 = scmp.ne.s32.totalorder %s36, %s39
      %p48 = scmp.eq.s32.totalorder %s17, 3
      %p49 = por %p47, %p48
      %p50 = scmp.ne.s32.totalorder %s39, %s40
      %p51 = scmp.eq.s32.totalorder %s17, 0
      %p52 = por %p50, %p51
      %p53 = scmp.ne.s32.totalorder %s39, %s40
      %p54 = scmp.eq.s32.totalorder %s18, 3
      %p55 = por %p53, %p54
      %p57 = scmp.ne.s32.totalorder %s40, %s56
      %p58 = scmp.eq.s32.totalorder %s18, 0
      %p59 = por %p57, %p58
      %s60 = ssub.s32 %s19, %s31
      %p61 = scmp.eq.s32.totalorder %s60, 0
      %s63 = sadd.s32 %s62, 1
      %s64 = scalar_select %p61, %s62, %s63
      %p67 = pneg %p61
      %p68 = scmp.eq.s32.totalorder %s12, 3
      %p69 = por %p67, %p68
      %p70 = scmp.ne.s32.totalorder %s62, %s65
      %p71 = scmp.eq.s32.totalorder %s12, 0
      %p72 = por %p70, %p71
      %p73 = scmp.ne.s32.totalorder %s62, %s65
      %p74 = scmp.eq.s32.totalorder %s17, 3
      %p75 = por %p73, %p74
      %p76 = scmp.ne.s32.totalorder %s65, %s66
      %p77 = scmp.eq.s32.totalorder %s17, 0
      %p78 = por %p76, %p77
      %p79 = scmp.ne.s32.totalorder %s65, %s66
      %p80 = scmp.eq.s32.totalorder %s18, 3
      %p81 = por %p79, %p80
      %p83 = scmp.ne.s32.totalorder %s66, %s82
      %p84 = scmp.eq.s32.totalorder %s18, 0
      %p85 = por %p83, %p84
      %s87 = sadd.s32 %s86, 1
      %p90 = scmp.eq.s32.totalorder %s12, 3
      %p91 = scmp.ne.s32.totalorder %s86, %s88
      %p92 = scmp.eq.s32.totalorder %s12, 0
      %p93 = por %p91, %p92
      %p94 = scmp.ne.s32.totalorder %s86, %s88
      %p95 = scmp.eq.s32.totalorder %s17, 3
      %p96 = por %p94, %p95
      %p97 = scmp.ne.s32.totalorder %s88, %s89
      %p98 = scmp.eq.s32.totalorder %s17, 0
      %p99 = por %p97, %p98
      %p100 = scmp.ne.s32.totalorder %s88, %s89
      %p101 = scmp.eq.s32.totalorder %s18, 3
      %p102 = por %p100, %p101
      %p104 = scmp.ne.s32.totalorder %s89, %s103
      %p105 = scmp.eq.s32.totalorder %s18, 0
      %p106 = por %p104, %p105
      %s107 = ssub.s32 %s19, %s31
      %s108 = ssub.s32 %s20, %s27
      %s109 = sor.u32 %s107, %s108
      %p110 = scmp.eq.s32.totalorder %s109, 0
      %s112 = sadd.s32 %s111, 1
      %s113 = scalar_select %p110, %s111, %s112
      %p116 = pneg %p110
      %p117 = scmp.eq.s32.totalorder %s12, 3
      %p118 = por %p116, %p117
      %p119 = scmp.ne.s32.totalorder %s111, %s114
      %p120 = scmp.eq.s32.totalorder %s12, 0
      %p121 = por %p119, %p120
      %p122 = scmp.ne.s32.totalorder %s111, %s114
      %p123 = scmp.eq.s32.totalorder %s17, 3
      %p124 = por %p122, %p123
      %p125 = scmp.ne.s32.totalorder %s114, %s115
      %p126 = scmp.eq.s32.totalorder %s17, 0
      %p127 = por %p125, %p126
      %p128 = scmp.ne.s32.totalorder %s114, %s115
      %p129 = scmp.eq.s32.totalorder %s18, 3
      %p130 = por %p128, %p129
      %p132 = scmp.ne.s32.totalorder %s115, %s131
      %p133 = scmp.eq.s32.totalorder %s18, 0
      %p134 = por %p132, %p133
      %p135 = scmp.le.s32.totalorder 1, %s12
      %p136 = scmp.lt.s32.totalorder %s12, 5
      %p137 = pnand %p135, %p136
      %p138 = pneg %p137
      // Predicated region
      $region9: #{tpu_custom_call.1} parent=5 // pred_check
        _
      $region10: #{tpu_custom_call.1} parent=5 // pred_check_branch
        %140 = sbr.rel (%p137) target = $region12
      $region11: #{tpu_custom_call.1} parent=5 // pred_region
        %s141 = ssub.s32 %s12, 1
        // Predicated region
        $region13: #{tpu_custom_call.1} parent=11 // pred_check
          %p142 = pneg %p99
        $region14: #{tpu_custom_call.1} parent=11 // pred_check_branch
          %144 = sbr.rel (%p142) target = $region16
        $region15: #{tpu_custom_call.1} parent=11 // pred_region
          _
        $region16: #{tpu_custom_call.1} parent=11 // pred_fallthru
          _
      $region12: #{tpu_custom_call.1} parent=5 // pred_fallthru
        _
      %p145 = scmp.lt.s32.totalorder %s12, 4
      // Predicated region
      $region17: #{tpu_custom_call.1} parent=5 // pred_check
        %p146 = pneg %p145
      $region18: #{tpu_custom_call.1} parent=5 // pred_check_branch
        %148 = sbr.rel (%p146) target = $region20
      $region19: #{tpu_custom_call.1} parent=5 // pred_region
        // Predicated region
        $region21: #{tpu_custom_call.1} parent=19 // pred_check
          %p149 = pneg %p46
        $region22: #{tpu_custom_call.1} parent=19 // pred_check_branch
          %151 = sbr.rel (%p149) target = $region24
        $region23: #{tpu_custom_call.1} parent=19 // pred_region
          %s152 = sand.u32 %s36, 1
          %s153 = scalar_lea.sflag [#allocation3], %s152
          %s154 = sand.u32 %s36, 1
          %s155 = smul.addr %s154, 8
          %s156 = scalar_lea.vmem [#allocation2], %s155
          %s158 = ssub.s32 128, 128
          %159 = vsyncadd %s153, %s158
          %s160 = smul.addr %s19, 2
          %s161 = sadd.s32 %s20, %s160
          %s162 = smul.addr %s161, 128
          %s163 = scalar_lea.hbm %s0, %s162
          %s165 = sshll.u32 %s156, 4
          %s166 = int_to_ptr.vmem [resolvable:$true] %s165
          %168 = dma.hbm_to_vmem [thread:$0]  %s163, 128, %s166, %s153
        $region24: #{tpu_custom_call.1} parent=19 // pred_fallthru
          _
        // Predicated region
        $region25: #{tpu_custom_call.1} parent=19 // pred_check
          %p169 = pneg %p72
        $region26: #{tpu_custom_call.1} parent=19 // pred_check_branch
          %171 = sbr.rel (%p169) target = $region28
        $region27: #{tpu_custom_call.1} parent=19 // pred_region
          %p172 = scmp.lt.s32.totalorder %s19, 1
          %s173 = scalar_select %p172, %s19, 1
          %s174 = smul.addr %s173, 4
          %s175 = scalar_lea.vmem %s1, %s174
        $region28: #{tpu_custom_call.1} parent=19 // pred_fallthru
          _
      $region20: #{tpu_custom_call.1} parent=5 // pred_fallthru
        _
      %p176 = scmp.le.s32.totalorder 1, %s12
      %p177 = scmp.lt.s32.totalorder %s12, 5
      %p178 = pnand %p176, %p177
      %p179 = pneg %p178
      // Predicated region
      $region29: #{tpu_custom_call.1} parent=5 // pred_check
        _
      $region30: #{tpu_custom_call.1} parent=5 // pred_check_branch
        %181 = sbr.rel (%p178) target = $region32
      $region31: #{tpu_custom_call.1} parent=5 // pred_region
        %s182 = ssub.s32 %s12, 1
        %s183 = sand.u32 %s39, 1
        %s184 = scalar_lea.sflag [#allocation3], %s183
        %s185 = sand.u32 %s39, 1
        %s186 = smul.addr %s185, 8
        %s187 = scalar_lea.vmem [#allocation2], %s186
        // Predicated region
        $region33: #{tpu_custom_call.1} parent=31 // pred_check
          %p188 = pneg %p52
        $region34: #{tpu_custom_call.1} parent=31 // pred_check_branch
          %190 = sbr.rel (%p188) target = $region36
        $region35: #{tpu_custom_call.1} parent=31 // pred_region
          %191 = dma.done %s184, 128
        $region36: #{tpu_custom_call.1} parent=31 // pred_fallthru
          _
        %s192 = sand.u32 %s39, 1
        %s193 = scalar_lea.sflag [#allocation3], %s192
        %s194 = sand.u32 %s39, 1
        %s195 = smul.addr %s194, 8
        %s196 = scalar_lea.vmem [#allocation2], %s195
        %p197 = pneg %p52
        %p198 = pneg %p49
        %p199 = scmp.lt.s32.totalorder %s21, 1
        %s200 = scalar_select %p199, %s21, 1
        %s201 = smul.addr %s200, 4
        %s202 = scalar_lea.vmem %s1, %s201
        %p203 = pneg %p78
        %p204 = pneg %p75
        %p205 = pneg %p99
        %p206 = pneg %p96
        %p207 = pneg %p127
        %p208 = pneg %p124
        %p209 = scmp.lt.s32.totalorder %s21, 1
        %s210 = scalar_select %p209, %s21, 1
        %p211 = scmp.lt.s32.totalorder %s22, 1
        %s212 = scalar_select %p211, %s22, 1
        %s213 = smul.addr %s210, 2
        %s214 = sadd.s32 %s212, %s213
        %s215 = smul.addr %s214, 4
        %s216 = scalar_lea.vmem %s3, %s215
        %p217 = scmp.lt.s32.totalorder %s21, 1
        %s218 = scalar_select %p217, %s21, 1
        %s219 = smul.addr %s218, 4
        %s220 = scalar_lea.vmem %s1, %s219
        %p221 = scmp.lt.s32.totalorder %s21, 1
        %s222 = scalar_select %p221, %s21, 1
        %p223 = scmp.lt.s32.totalorder %s22, 1
        %s224 = scalar_select %p223, %s22, 1
        %s225 = smul.addr %s222, 2
        %s226 = sadd.s32 %s224, %s225
        %s227 = smul.addr %s226, 4
        %s228 = scalar_lea.vmem %s3, %s227
        %v229 = vld [vmem:[%s220] sm:$0x7]
        %v230 = vld [vmem:[%s187] sm:$0xff]
        %v231 = vld [vmem:[%s2] sm:$0x7]
        %233 = vset.pattern.permute.xlu0 0
        %234 = vperm.xlu0 %233, %v231
        %v235 = vpop.permute.xlu0 %234
        %vm237 = vcmask 64512
        %v239 = vsel %vm237, %v229, 0
        %241 = vmatprep.subr.mxu0 0.0
        %242 = vmatpush1.msra.mxu0 0.0
        %243 = vmatprep.subr.mxu0 0.0
        %244 = vmatpush1.msra.mxu0 0.0
        %245 = vmatprep.subr.mxu0 0.0
        %246 = vmatpush1.msra.mxu0 0.0
        %247 = vmatprep.subr.mxu0 0.0
        %248 = vmatpush1.msra.mxu0 0.0
        %249 = vmatprep.subr.mxu0 0.0
        %250 = vmatpush1.msra.mxu0 0.0
        %251 = vmatprep.subr.mxu0 0.0
        %252 = vmatpush1.msra.mxu0 0.0
        %253 = vmatprep.subr.mxu0 0.0
        %254 = vmatpush1.msra.mxu0 0.0
        %255 = vmatprep.subr.mxu0 0.0
        %256 = vmatpush1.msra.mxu0 0.0
        %257 = vmatprep.subr.mxu0 0.0
        %258 = vmatpush1.msra.mxu0 0.0
        %259 = vmatprep.subr.mxu0 0.0
        %260 = vmatpush1.msra.mxu0 0.0
        %261 = vmatprep.subr.mxu0 0.0
        %262 = vmatpush1.msra.mxu0 0.0
        %263 = vmatprep.subr.mxu0 0.0
        %264 = vmatpush1.msra.mxu0 0.0
        %265 = vmatprep.subr.mxu0 0.0
        %266 = vmatpush1.msra.mxu0 0.0
        %267 = vmatprep.subr.mxu0 0.0
        %268 = vmatpush1.msra.mxu0 0.0
        %269 = vmatprep.subr.mxu0 0.0
        %270 = vmatpush1.msra.mxu0 0.0
        %271 = vmatprep.subr.mxu0 0.0
        %272 = vmatpush1.msra.mxu0 %v230
        %273 = vmatprep.subr.mxu0 0.0
        %274 = vmatpush2.msra.mxu0 0.0
        %275 = vmatprep.subr.mxu0 0.0
        %276 = vmatpush2.msra.mxu0 0.0
        %277 = vmatprep.subr.mxu0 0.0
        %278 = vmatpush2.msra.mxu0 0.0
        %279 = vmatprep.subr.mxu0 0.0
        %280 = vmatpush2.msra.mxu0 0.0
        %281 = vmatprep.subr.mxu0 0.0
        %282 = vmatpush2.msra.mxu0 0.0
        %283 = vmatprep.subr.mxu0 0.0
        %284 = vmatpush2.msra.mxu0 0.0
        %285 = vmatprep.subr.mxu0 0.0
        %286 = vmatpush2.msra.mxu0 0.0
        %287 = vmatprep.subr.mxu0 0.0
        %288 = vmatpush2.msra.mxu0 0.0
        %289 = vmatprep.subr.mxu0 0.0
        %290 = vmatpush2.msra.mxu0 0.0
        %291 = vmatprep.subr.mxu0 0.0
        %292 = vmatpush2.msra.mxu0 0.0
        %293 = vmatprep.subr.mxu0 0.0
        %294 = vmatpush2.msra.mxu0 0.0
        %295 = vmatprep.subr.mxu0 0.0
        %296 = vmatpush2.msra.mxu0 0.0
        %297 = vmatprep.subr.mxu0 0.0
        %298 = vmatpush2.msra.mxu0 0.0
        %299 = vmatprep.subr.mxu0 0.0
        %300 = vmatpush2.msra.mxu0 0.0
        %301 = vmatprep.subr.mxu0 0.0
        %302 = vmatpush2.msra.mxu0 0.0
        %303 = vmatprep.subr.mxu0 0.0
        %304 = vmatpush2.msra.mxu0 0.0
        %305 = vmatprep.mubr.f32.mxu0 0.0
        %306 = vmatmul.mubr.f32.gmra.mxu0 %v239
        %v307 = vpop.f32.mrf.mxu0
        %v308 = vadd.f32 %v235, %v307
        %v309 = vpop.f32.mrf.mxu0
        %310 = vdwg.mxu0
        %311 = vst [vmem:[%s228] sm:$0x7] %v308
        %p312 = scmp.lt.s32.totalorder %s21, 1
        %s313 = scalar_select %p312, %s21, 1
        %p314 = scmp.lt.s32.totalorder %s22, 1
        %s315 = scalar_select %p314, %s22, 1
        %s316 = smul.addr %s313, 2
        %s317 = sadd.s32 %s315, %s316
        %s318 = smul.addr %s317, 4
        %s319 = scalar_lea.vmem %s3, %s318
        // Predicated region
        $region37: #{tpu_custom_call.1} parent=31 // pred_check
          %p320 = pneg %p124
        $region38: #{tpu_custom_call.1} parent=31 // pred_check_branch
          %322 = sbr.rel (%p320) target = $region40
        $region39: #{tpu_custom_call.1} parent=31 // pred_region
          _
        $region40: #{tpu_custom_call.1} parent=31 // pred_fallthru
          _
      $region32: #{tpu_custom_call.1} parent=5 // pred_fallthru
        _
      %p323 = scmp.le.s32.totalorder 2, %s12
      // Predicated region
      $region41: #{tpu_custom_call.1} parent=5 // pred_check
        %p324 = pneg %p323
      $region42: #{tpu_custom_call.1} parent=5 // pred_check_branch
        %326 = sbr.rel (%p324) target = $region44
      $region43: #{tpu_custom_call.1} parent=5 // pred_region
        %s327 = ssub.s32 %s12, 2
        // Predicated region
        $region45: #{tpu_custom_call.1} parent=43 // pred_check
          %p328 = pneg %p130
        $region46: #{tpu_custom_call.1} parent=43 // pred_check_branch
          %330 = sbr.rel (%p328) target = $region48
        $region47: #{tpu_custom_call.1} parent=43 // pred_region
          %p331 = scmp.lt.s32.totalorder %s23, 1
          %s332 = scalar_select %p331, %s23, 1
          %p333 = scmp.lt.s32.totalorder %s24, 1
          %s334 = scalar_select %p333, %s24, 1
          %s335 = smul.addr %s332, 2
          %s336 = sadd.s32 %s334, %s335
          %s337 = smul.addr %s336, 4
          %s338 = scalar_lea.vmem %s3, %s337
        $region48: #{tpu_custom_call.1} parent=43 // pred_fallthru
          _
      $region44: #{tpu_custom_call.1} parent=5 // pred_fallthru
        _
    $region6: #{tpu_custom_call.1} parent=1 // loop_footer
      %s16 = sadd.s32 1, %s12
    $region7: #{tpu_custom_call.1} parent=1 // loop_footer_branch
      %11 = sbr.rel target = $region3
    $region8: #{tpu_custom_call.1} parent=1 // loop_exit
      _
    %339 = vsyncpa [#allocation3], 1
    %s340 = scalar_lea.sflag [#allocation3], 1
    %341 = vsyncpa %s340, 1

</llo_original>
